<compile_context>
chip_gen: v6e
topology: v6e:2x2x1
jax: 0.10.0
libtpu: 0.0.40
codegen_flags: <defaults>
</compile_context>

<pallas_src>
import functools

import jax
import jax.numpy as jnp
from jax.experimental import pallas as pl
from jax.experimental.pallas import tpu as pltpu

EPS = 1e-5
LANE = 128  # lane width: every feature dim is zero-padded to this


def _bn_relu_fused(h, gamma, beta, inv_b):
    """Training-mode BatchNorm1d + ReLU, fused scale/shift form (all f32).

    Single pass over h for both reductions: var = E[h^2] - mean^2.
    Padded (zero) lanes stay exactly zero because gamma/beta are zero-padded.
    """
    mean = jnp.sum(h, axis=0, keepdims=True) * inv_b
    mean_sq = jnp.sum(h * h, axis=0, keepdims=True) * inv_b
    var = mean_sq - mean * mean
    scale = gamma * jax.lax.rsqrt(var + EPS)
    shift = beta - mean * scale
    return jnp.maximum(h * scale + shift, 0.0)


def qnet_kernel(x_ref, w_ref, bn_ref, out_ref):
    # x_ref:  (B, 128) f32      (input features zero-padded to 128 lanes)
    # w_ref:  (4, 128, 128) bf16 (per-layer weight slabs, zero-padded)
    # bn_ref: (8, 128) f32       rows: g1, be1, g2, be2, g3, be3, b4, 0
    # out_ref:(B, 128) f32       (Q-values in lanes [0, output_size))
    inv_b = 1.0 / x_ref.shape[0]  # static Python float

    # Layer 1: Linear (bias cancelled by BN) -> BN -> ReLU
    h = jnp.dot(x_ref[...].astype(jnp.bfloat16), w_ref[0],
                preferred_element_type=jnp.float32)
    h = _bn_relu_fused(h, bn_ref[0:1, :], bn_ref[1:2, :], inv_b)

    # Layer 2
    h = jnp.dot(h.astype(jnp.bfloat16), w_ref[1],
                preferred_element_type=jnp.float32)
    h = _bn_relu_fused(h, bn_ref[2:3, :], bn_ref[3:4, :], inv_b)

    # Layer 3
    h = jnp.dot(h.astype(jnp.bfloat16), w_ref[2],
                preferred_element_type=jnp.float32)
    h = _bn_relu_fused(h, bn_ref[4:5, :], bn_ref[5:6, :], inv_b)

    # Layer 4: plain Linear with bias b4
    h = jnp.dot(h.astype(jnp.bfloat16), w_ref[3],
                preferred_element_type=jnp.float32)
    out_ref[...] = (h + bn_ref[6:7, :]).astype(out_ref.dtype)


def pack_params(params):
    """Pack the per-layer params into 2 lane-padded buffers (done once)."""
    def pad_w(w):  # (fin, fout) -> (LANE, LANE), zero padded
        buf = jnp.zeros((LANE, LANE), jnp.float32)
        return buf.at[: w.shape[0], : w.shape[1]].set(w)

    def pad_v(v):  # (1, fout) or (fout,) -> (LANE,), zero padded
        v = jnp.asarray(v).reshape(-1)
        return jnp.zeros((LANE,), jnp.float32).at[: v.shape[0]].set(v)

    weights = jnp.stack(
        [pad_w(params["w1"]), pad_w(params["w2"]),
         pad_w(params["w3"]), pad_w(params["w4"])]
    ).astype(jnp.bfloat16)

    bnparams = jnp.stack(
        [pad_v(params["g1"]), pad_v(params["be1"]),
         pad_v(params["g2"]), pad_v(params["be2"]),
         pad_v(params["g3"]), pad_v(params["be3"]),
         pad_v(params["b4"]), jnp.zeros((LANE,), jnp.float32)]
    )
    return weights, bnparams


@functools.partial(jax.jit, static_argnames=("output_size",))
def advanced_qnet_forward(x, weights_packed, bn_packed, output_size):
    """x: (B, input_size) or (input_size,) f32.  Returns (B, output_size)."""
    # NOTE: PyTorch BatchNorm1d in training mode raises for batch size 1; we
    # mirror the module's unsqueeze path instead of erroring.
    single_sample = x.ndim == 1
    if single_sample:
        x = x[None, :]
    B, F = x.shape

    # Lane-pad the input features to 128 (zeros beyond the true input_size).
    x_pad = jnp.zeros((B, LANE), jnp.float32).at[:, :F].set(x.astype(jnp.float32))

    out = pl.pallas_call(
        qnet_kernel,
        out_shape=jax.ShapeDtypeStruct((B, LANE), jnp.float32),
        in_specs=[pl.BlockSpec(memory_space=pltpu.MemorySpace.VMEM)] * 3,
        out_specs=pl.BlockSpec(memory_space=pltpu.MemorySpace.VMEM),
    )(x_pad, weights_packed, bn_packed)

    out = out[:, :output_size]
    if single_sample:
        out = out[0]
    return out


def init_params(key, input_size, hidden_size, output_size):
    """Synthetic init mimicking nn.Linear's uniform(-1/sqrt(fan_in), +)."""
    half = hidden_size // 2
    dims = [(input_size, hidden_size),
            (hidden_size, hidden_size),
            (hidden_size, half),
            (half, output_size)]
    params = {}
    for i, (fin, fout) in enumerate(dims, start=1):
        key, kw, kb = jax.random.split(key, 3)
        bound = 1.0 / (fin ** 0.5)
        params[f"w{i}"] = jax.random.uniform(
            kw, (fin, fout), jnp.float32, minval=-bound, maxval=bound)
        params[f"b{i}"] = jax.random.uniform(
            kb, (1, fout), jnp.float32, minval=-bound, maxval=bound)
        if i < 4:
            params[f"g{i}"] = jnp.ones((1, fout), jnp.float32)   # BN gamma
            params[f"be{i}"] = jnp.zeros((1, fout), jnp.float32)  # BN beta
    return params


def reference_forward(x, params):
    """Pure-JAX f32 reference matching the PyTorch module (training-mode BN,
    including the linear biases b1-b3 that the kernel omits)."""
    single = x.ndim == 1
    if single:
        x = x[None, :]
    h = x
    for i in range(1, 4):
        h = h @ params[f"w{i}"] + params[f"b{i}"]
        mean = jnp.mean(h, axis=0, keepdims=True)
        var = jnp.mean((h - mean) ** 2, axis=0, keepdims=True)
        h = (h - mean) / jnp.sqrt(var + EPS) * params[f"g{i}"] + params[f"be{i}"]
        h = jnp.maximum(h, 0.0)
    h = h @ params["w4"] + params["b4"]
    if single:
        h = h[0]
    return h


if __name__ == "__main__":
    # Small shapes consistent with the module (snake-game style Q-net).
    input_size, hidden_size, output_size = 11, 32, 3
    batch = 8

    key = jax.random.PRNGKey(0)
    key, kx = jax.random.split(key)
    params = init_params(key, input_size, hidden_size, output_size)
    x = jax.random.normal(kx, (batch, input_size), jnp.float32)

    weights_packed, bn_packed = pack_params(params)

    out = advanced_qnet_forward(x, weights_packed, bn_packed, output_size)
    out = jax.block_until_ready(out)

    ref = reference_forward(x, params)
    assert out.shape == (batch, output_size)
    # Tolerance accounts for bf16 MXU operands vs the f32 reference.
    assert jnp.allclose(out, ref, atol=5e-2, rtol=5e-2), (
        f"mismatch vs reference, max abs diff = {jnp.max(jnp.abs(out - ref))}")

    print("KERNEL_OK")
</pallas_src>

<mosaic_0001>
module attributes {stable_mosaic.version = 11 : i64} {
  func.func @qnet_kernel(%arg0: memref<8x128xf32, #tpu.memory_space<vmem>>, %arg1: memref<4x128x128xbf16, #tpu.memory_space<vmem>>, %arg2: memref<8x128xf32, #tpu.memory_space<vmem>>, %arg3: memref<8x128xf32, #tpu.memory_space<vmem>>) attributes {dimension_semantics = [], scalar_prefetch = 0 : i64, scratch_operands = 0 : i64, tpu.core_type = #tpu.core_type<tc>} {
    %c0 = arith.constant 0 : index
    %c0_0 = arith.constant 0 : index
    %0 = vector.load %arg0[%c0, %c0_0] : memref<8x128xf32, #tpu.memory_space<vmem>>, vector<8x128xf32>
    %1 = arith.truncf %0 : vector<8x128xf32> to vector<8x128xbf16>
    %c0_1 = arith.constant 0 : index
    %c0_2 = arith.constant 0 : index
    %c0_3 = arith.constant 0 : index
    %2 = vector.load %arg1[%c0_1, %c0_2, %c0_3] : memref<4x128x128xbf16, #tpu.memory_space<vmem>>, vector<1x128x128xbf16>
    %3 = vector.shape_cast %2 : vector<1x128x128xbf16> to vector<128x128xbf16>
    %cst = arith.constant dense<0.000000e+00> : vector<8x128xf32>
    %4 = tpu.matmul %1, %3, %cst {dimension_numbers = #tpu.dot_dimension_numbers<[1], [0], [0], [1], [0, 0, 1, 1], [], []>} : vector<8x128xbf16>, vector<128x128xbf16>, vector<8x128xf32> -> vector<8x128xf32>
    %c0_4 = arith.constant 0 : index
    %c0_5 = arith.constant 0 : index
    %5 = vector.load %arg2[%c0_4, %c0_5] : memref<8x128xf32, #tpu.memory_space<vmem>>, vector<1x128xf32>
    %c1 = arith.constant 1 : index
    %c0_6 = arith.constant 0 : index
    %6 = vector.load %arg2[%c1, %c0_6] : memref<8x128xf32, #tpu.memory_space<vmem>>, vector<1x128xf32>
    %cst_7 = arith.constant dense<0.000000e+00> : vector<128xf32>
    %7 = vector.multi_reduction <add>, %4, %cst_7 [0] : vector<8x128xf32> to vector<128xf32>
    %8 = vector.shape_cast %7 : vector<128xf32> to vector<1x128xf32>
    %cst_8 = arith.constant 1.250000e-01 : f32
    %9 = vector.broadcast %cst_8 : f32 to vector<1x128xf32>
    %10 = arith.mulf %8, %9 : vector<1x128xf32>
    %11 = arith.mulf %4, %4 : vector<8x128xf32>
    %cst_9 = arith.constant dense<0.000000e+00> : vector<128xf32>
    %12 = vector.multi_reduction <add>, %11, %cst_9 [0] : vector<8x128xf32> to vector<128xf32>
    %13 = vector.shape_cast %12 : vector<128xf32> to vector<1x128xf32>
    %cst_10 = arith.constant 1.250000e-01 : f32
    %14 = vector.broadcast %cst_10 : f32 to vector<1x128xf32>
    %15 = arith.mulf %13, %14 : vector<1x128xf32>
    %16 = arith.mulf %10, %10 : vector<1x128xf32>
    %17 = arith.subf %15, %16 : vector<1x128xf32>
    %cst_11 = arith.constant 9.99999974E-6 : f32
    %18 = vector.broadcast %cst_11 : f32 to vector<1x128xf32>
    %19 = arith.addf %17, %18 : vector<1x128xf32>
    %20 = math.rsqrt %19 : vector<1x128xf32>
    %21 = arith.mulf %5, %20 : vector<1x128xf32>
    %22 = arith.mulf %10, %21 : vector<1x128xf32>
    %23 = arith.subf %6, %22 : vector<1x128xf32>
    %24 = vector.broadcast %21 : vector<1x128xf32> to vector<8x128xf32>
    %25 = arith.mulf %4, %24 : vector<8x128xf32>
    %26 = vector.broadcast %23 : vector<1x128xf32> to vector<8x128xf32>
    %27 = arith.addf %25, %26 : vector<8x128xf32>
    %cst_12 = arith.constant 0.000000e+00 : f32
    %28 = vector.broadcast %cst_12 : f32 to vector<8x128xf32>
    %29 = arith.maximumf %27, %28 : vector<8x128xf32>
    %30 = arith.truncf %29 : vector<8x128xf32> to vector<8x128xbf16>
    %c1_13 = arith.constant 1 : index
    %c0_14 = arith.constant 0 : index
    %c0_15 = arith.constant 0 : index
    %31 = vector.load %arg1[%c1_13, %c0_14, %c0_15] : memref<4x128x128xbf16, #tpu.memory_space<vmem>>, vector<1x128x128xbf16>
    %32 = vector.shape_cast %31 : vector<1x128x128xbf16> to vector<128x128xbf16>
    %cst_16 = arith.constant dense<0.000000e+00> : vector<8x128xf32>
    %33 = tpu.matmul %30, %32, %cst_16 {dimension_numbers = #tpu.dot_dimension_numbers<[1], [0], [0], [1], [0, 0, 1, 1], [], []>} : vector<8x128xbf16>, vector<128x128xbf16>, vector<8x128xf32> -> vector<8x128xf32>
    %c2 = arith.constant 2 : index
    %c0_17 = arith.constant 0 : index
    %34 = vector.load %arg2[%c2, %c0_17] : memref<8x128xf32, #tpu.memory_space<vmem>>, vector<1x128xf32>
    %c3 = arith.constant 3 : index
    %c0_18 = arith.constant 0 : index
    %35 = vector.load %arg2[%c3, %c0_18] : memref<8x128xf32, #tpu.memory_space<vmem>>, vector<1x128xf32>
    %cst_19 = arith.constant dense<0.000000e+00> : vector<128xf32>
    %36 = vector.multi_reduction <add>, %33, %cst_19 [0] : vector<8x128xf32> to vector<128xf32>
    %37 = vector.shape_cast %36 : vector<128xf32> to vector<1x128xf32>
    %cst_20 = arith.constant 1.250000e-01 : f32
    %38 = vector.broadcast %cst_20 : f32 to vector<1x128xf32>
    %39 = arith.mulf %37, %38 : vector<1x128xf32>
    %40 = arith.mulf %33, %33 : vector<8x128xf32>
    %cst_21 = arith.constant dense<0.000000e+00> : vector<128xf32>
    %41 = vector.multi_reduction <add>, %40, %cst_21 [0] : vector<8x128xf32> to vector<128xf32>
    %42 = vector.shape_cast %41 : vector<128xf32> to vector<1x128xf32>
    %cst_22 = arith.constant 1.250000e-01 : f32
    %43 = vector.broadcast %cst_22 : f32 to vector<1x128xf32>
    %44 = arith.mulf %42, %43 : vector<1x128xf32>
    %45 = arith.mulf %39, %39 : vector<1x128xf32>
    %46 = arith.subf %44, %45 : vector<1x128xf32>
    %cst_23 = arith.constant 9.99999974E-6 : f32
    %47 = vector.broadcast %cst_23 : f32 to vector<1x128xf32>
    %48 = arith.addf %46, %47 : vector<1x128xf32>
    %49 = math.rsqrt %48 : vector<1x128xf32>
    %50 = arith.mulf %34, %49 : vector<1x128xf32>
    %51 = arith.mulf %39, %50 : vector<1x128xf32>
    %52 = arith.subf %35, %51 : vector<1x128xf32>
    %53 = vector.broadcast %50 : vector<1x128xf32> to vector<8x128xf32>
    %54 = arith.mulf %33, %53 : vector<8x128xf32>
    %55 = vector.broadcast %52 : vector<1x128xf32> to vector<8x128xf32>
    %56 = arith.addf %54, %55 : vector<8x128xf32>
    %cst_24 = arith.constant 0.000000e+00 : f32
    %57 = vector.broadcast %cst_24 : f32 to vector<8x128xf32>
    %58 = arith.maximumf %56, %57 : vector<8x128xf32>
    %59 = arith.truncf %58 : vector<8x128xf32> to vector<8x128xbf16>
    %c2_25 = arith.constant 2 : index
    %c0_26 = arith.constant 0 : index
    %c0_27 = arith.constant 0 : index
    %60 = vector.load %arg1[%c2_25, %c0_26, %c0_27] : memref<4x128x128xbf16, #tpu.memory_space<vmem>>, vector<1x128x128xbf16>
    %61 = vector.shape_cast %60 : vector<1x128x128xbf16> to vector<128x128xbf16>
    %cst_28 = arith.constant dense<0.000000e+00> : vector<8x128xf32>
    %62 = tpu.matmul %59, %61, %cst_28 {dimension_numbers = #tpu.dot_dimension_numbers<[1], [0], [0], [1], [0, 0, 1, 1], [], []>} : vector<8x128xbf16>, vector<128x128xbf16>, vector<8x128xf32> -> vector<8x128xf32>
    %c4 = arith.constant 4 : index
    %c0_29 = arith.constant 0 : index
    %63 = vector.load %arg2[%c4, %c0_29] : memref<8x128xf32, #tpu.memory_space<vmem>>, vector<1x128xf32>
    %c5 = arith.constant 5 : index
    %c0_30 = arith.constant 0 : index
    %64 = vector.load %arg2[%c5, %c0_30] : memref<8x128xf32, #tpu.memory_space<vmem>>, vector<1x128xf32>
    %cst_31 = arith.constant dense<0.000000e+00> : vector<128xf32>
    %65 = vector.multi_reduction <add>, %62, %cst_31 [0] : vector<8x128xf32> to vector<128xf32>
    %66 = vector.shape_cast %65 : vector<128xf32> to vector<1x128xf32>
    %cst_32 = arith.constant 1.250000e-01 : f32
    %67 = vector.broadcast %cst_32 : f32 to vector<1x128xf32>
    %68 = arith.mulf %66, %67 : vector<1x128xf32>
    %69 = arith.mulf %62, %62 : vector<8x128xf32>
    %cst_33 = arith.constant dense<0.000000e+00> : vector<128xf32>
    %70 = vector.multi_reduction <add>, %69, %cst_33 [0] : vector<8x128xf32> to vector<128xf32>
    %71 = vector.shape_cast %70 : vector<128xf32> to vector<1x128xf32>
    %cst_34 = arith.constant 1.250000e-01 : f32
    %72 = vector.broadcast %cst_34 : f32 to vector<1x128xf32>
    %73 = arith.mulf %71, %72 : vector<1x128xf32>
    %74 = arith.mulf %68, %68 : vector<1x128xf32>
    %75 = arith.subf %73, %74 : vector<1x128xf32>
    %cst_35 = arith.constant 9.99999974E-6 : f32
    %76 = vector.broadcast %cst_35 : f32 to vector<1x128xf32>
    %77 = arith.addf %75, %76 : vector<1x128xf32>
    %78 = math.rsqrt %77 : vector<1x128xf32>
    %79 = arith.mulf %63, %78 : vector<1x128xf32>
    %80 = arith.mulf %68, %79 : vector<1x128xf32>
    %81 = arith.subf %64, %80 : vector<1x128xf32>
    %82 = vector.broadcast %79 : vector<1x128xf32> to vector<8x128xf32>
    %83 = arith.mulf %62, %82 : vector<8x128xf32>
    %84 = vector.broadcast %81 : vector<1x128xf32> to vector<8x128xf32>
    %85 = arith.addf %83, %84 : vector<8x128xf32>
    %cst_36 = arith.constant 0.000000e+00 : f32
    %86 = vector.broadcast %cst_36 : f32 to vector<8x128xf32>
    %87 = arith.maximumf %85, %86 : vector<8x128xf32>
    %88 = arith.truncf %87 : vector<8x128xf32> to vector<8x128xbf16>
    %c3_37 = arith.constant 3 : index
    %c0_38 = arith.constant 0 : index
    %c0_39 = arith.constant 0 : index
    %89 = vector.load %arg1[%c3_37, %c0_38, %c0_39] : memref<4x128x128xbf16, #tpu.memory_space<vmem>>, vector<1x128x128xbf16>
    %90 = vector.shape_cast %89 : vector<1x128x128xbf16> to vector<128x128xbf16>
    %cst_40 = arith.constant dense<0.000000e+00> : vector<8x128xf32>
    %91 = tpu.matmul %88, %90, %cst_40 {dimension_numbers = #tpu.dot_dimension_numbers<[1], [0], [0], [1], [0, 0, 1, 1], [], []>} : vector<8x128xbf16>, vector<128x128xbf16>, vector<8x128xf32> -> vector<8x128xf32>
    %c6 = arith.constant 6 : index
    %c0_41 = arith.constant 0 : index
    %92 = vector.load %arg2[%c6, %c0_41] : memref<8x128xf32, #tpu.memory_space<vmem>>, vector<1x128xf32>
    %93 = vector.broadcast %92 : vector<1x128xf32> to vector<8x128xf32>
    %94 = arith.addf %91, %93 : vector<8x128xf32>
    %c0_42 = arith.constant 0 : index
    %c0_43 = arith.constant 0 : index
    %95 = vector.load %arg3[%c0_42, %c0_43] : memref<8x128xf32, #tpu.memory_space<vmem>>, vector<8x128xf32>
    tpu.vector_store %arg3[%c0_42, %c0_43], %94 {strides = array<i32>} : memref<8x128xf32, #tpu.memory_space<vmem>>, vector<8x128xf32>,
    return
  }
}

</mosaic_0001>

<llo_original>
// kernel: advanced_qnet_forward.1
$region0: #{advanced_qnet_forward.1}
  #allocation0 [shape = 'u32[]', space=smem, size = 0x4, offset = 0x4, fixed_abs, tag = 'smem constant byte address 0x4 - core index']
  #allocation1 [shape = 'u32[144,128]{1,0:T(1,128)}', space=vmem, size = 0x12000, scoped, tag = 'internal scratch']
  %s0 = inlined_call_operand.vmem [shape: f32[8,128], index: 0, kind: input, shape index: {}]
  %s1 = inlined_call_operand.hbm [shape: bf16[4,128,128], index: 1, kind: input, shape index: {}]
  %s2 = inlined_call_operand.vmem [shape: f32[8,128], index: 2, kind: input, shape index: {}]
  %s3 = inlined_call_operand.vmem [shape: f32[8,128], index: 3, kind: output, shape index: {}]
  %s4 = sld [smem:[#allocation0]]
  $region26: #{advanced_qnet_forward.1} parent=0
    _
  %s6 = ssub.s32 1, %s4
  %s7 = scalar_select 0, %s6, %s4
  $region1: #{advanced_qnet_forward.1} parent=0
    #allocation2 [shape = 'u8[131072]{0}', space=vmem, size = 0x20000, scoped, tag = 'input window, operand 1, single buffered']
    #allocation3 [shape = 's32[1]{0}', space=sflag, size = 0x4, scoped, tag = 'scoped memory for advanced_qnet_forward.1']
    %8 = vsyncpa [#allocation3], 0
    // Predicated region
    $region2: #{advanced_qnet_forward.1} parent=1 // pred_check
      _
    $region3: #{advanced_qnet_forward.1} parent=1 // pred_check_branch
      %10 = sbr.rel (0) target = $region5
    $region4: #{advanced_qnet_forward.1} parent=1 // pred_region
      _
    $region5: #{advanced_qnet_forward.1} parent=1 // pred_fallthru
      _
    // Predicated region
    $region6: #{advanced_qnet_forward.1} parent=1 // pred_check
      _
    $region7: #{advanced_qnet_forward.1} parent=1 // pred_check_branch
      %12 = sbr.rel (0) target = $region9
    $region8: #{advanced_qnet_forward.1} parent=1 // pred_region
      %s14 = ssub.s32 4096, 4096
      %15 = vsyncadd [#allocation3], %s14
      %s16 = sshll.u32 [#allocation2], 4
      %s17 = int_to_ptr.vmem [resolvable:$true] %s16
      %22 = dma.hbm_to_vmem [thread:$0]  %s1, 4096, %s17, [#allocation3], 64, 64, 4
    $region9: #{advanced_qnet_forward.1} parent=1 // pred_fallthru
      _
    // Predicated region
    $region10: #{advanced_qnet_forward.1} parent=1 // pred_check
      _
    $region11: #{advanced_qnet_forward.1} parent=1 // pred_check_branch
      %24 = sbr.rel (0) target = $region13
    $region12: #{advanced_qnet_forward.1} parent=1 // pred_region
      _
    $region13: #{advanced_qnet_forward.1} parent=1 // pred_fallthru
      _
    // Predicated region
    $region14: #{advanced_qnet_forward.1} parent=1 // pred_check
      _
    $region15: #{advanced_qnet_forward.1} parent=1 // pred_check_branch
      %26 = sbr.rel (0) target = $region17
    $region16: #{advanced_qnet_forward.1} parent=1 // pred_region
      %27 = dma.done [#allocation3], 4096
    $region17: #{advanced_qnet_forward.1} parent=1 // pred_fallthru
      _
    %v29 = vld [vmem:[%s0] sm:$0xff]
    %v30 = vpack.c.bf16 %v29, %v29
    %v31 = vld [vmem:[#allocation2] sm:$0xf]
    %v32 = vld [vmem:[#allocation2 + $0x4] sm:$0xf]
    %v33 = vld [vmem:[#allocation2 + $0x8] sm:$0xf]
    %v34 = vld [vmem:[#allocation2 + $0xc] sm:$0xf]
    %v35 = vld [vmem:[#allocation2 + $0x10] sm:$0xf]
    %v36 = vld [vmem:[#allocation2 + $0x14] sm:$0xf]
    %v37 = vld [vmem:[#allocation2 + $0x18] sm:$0xf]
    %v38 = vld [vmem:[#allocation2 + $0x1c] sm:$0xf]
    %v39 = vld [vmem:[#allocation2 + $0x20] sm:$0xf]
    %v40 = vld [vmem:[#allocation2 + $0x24] sm:$0xf]
    %v41 = vld [vmem:[#allocation2 + $0x28] sm:$0xf]
    %v42 = vld [vmem:[#allocation2 + $0x2c] sm:$0xf]
    %v43 = vld [vmem:[#allocation2 + $0x30] sm:$0xf]
    %v44 = vld [vmem:[#allocation2 + $0x34] sm:$0xf]
    %v45 = vld [vmem:[#allocation2 + $0x38] sm:$0xf]
    %v46 = vld [vmem:[#allocation2 + $0x3c] sm:$0xf]
    %v63 = vunpack.c.l.b16 %v31
    %v64 = vunpack.c.l.b16 %v32
    %v65 = vunpack.c.l.b16 %v33
    %v66 = vunpack.c.l.b16 %v34
    %v67 = vunpack.c.l.b16 %v35
    %v68 = vunpack.c.l.b16 %v36
    %v69 = vunpack.c.l.b16 %v37
    %v70 = vunpack.c.l.b16 %v38
    %v71 = vunpack.c.l.b16 %v39
    %v72 = vunpack.c.l.b16 %v40
    %v73 = vunpack.c.l.b16 %v41
    %v74 = vunpack.c.l.b16 %v42
    %v75 = vunpack.c.l.b16 %v43
    %v76 = vunpack.c.l.b16 %v44
    %v77 = vunpack.c.l.b16 %v45
    %v78 = vunpack.c.l.b16 %v46
    %v79 = vpack.c.b16 %v64, %v63
    %v80 = vpack.c.b16 %v66, %v65
    %v81 = vpack.c.b16 %v68, %v67
    %v82 = vpack.c.b16 %v70, %v69
    %v83 = vpack.c.b16 %v72, %v71
    %v84 = vpack.c.b16 %v74, %v73
    %v85 = vpack.c.b16 %v76, %v75
    %v86 = vpack.c.b16 %v78, %v77
    %95 = vmatprep.subr.bf16.mxu0 0
    %96 = vmatpush1.bf16.msra.mxu0 %v86
    %97 = vmatprep.subr.bf16.mxu0 0
    %98 = vmatpush1.bf16.msra.mxu0 %v85
    %99 = vmatprep.subr.bf16.mxu0 0
    %100 = vmatpush1.bf16.msra.mxu0 %v84
    %101 = vmatprep.subr.bf16.mxu0 0
    %102 = vmatpush1.bf16.msra.mxu0 %v83
    %103 = vmatprep.subr.bf16.mxu0 0
    %104 = vmatpush1.bf16.msra.mxu0 %v82
    %105 = vmatprep.subr.bf16.mxu0 0
    %106 = vmatpush1.bf16.msra.mxu0 %v81
    %107 = vmatprep.subr.bf16.mxu0 0
    %108 = vmatpush1.bf16.msra.mxu0 %v80
    %109 = vmatprep.subr.bf16.mxu0 0
    %110 = vmatpush1.bf16.msra.mxu0 %v79
    %111 = vmatprep.subr.bf16.mxu0 0
    %112 = vmatpush2.bf16.msra.mxu0 0
    %113 = vmatprep.subr.bf16.mxu0 0
    %114 = vmatpush2.bf16.msra.mxu0 0
    %115 = vmatprep.subr.bf16.mxu0 0
    %116 = vmatpush2.bf16.msra.mxu0 0
    %117 = vmatprep.subr.bf16.mxu0 0
    %118 = vmatpush2.bf16.msra.mxu0 0
    %119 = vmatprep.subr.bf16.mxu0 0
    %120 = vmatpush2.bf16.msra.mxu0 0
    %121 = vmatprep.subr.bf16.mxu0 0
    %122 = vmatpush2.bf16.msra.mxu0 0
    %123 = vmatprep.subr.bf16.mxu0 0
    %124 = vmatpush2.bf16.msra.mxu0 0
    %125 = vmatprep.subr.bf16.mxu0 0
    %126 = vmatpush2.bf16.msra.mxu0 0
    %127 = vmatprep.mubr.bf16.mxu0 0
    %128 = vmatmul.mubr.bf16.gmra.mxu0 %v30
    %v129 = vpop.f32.mrf.mxu0
    %v130 = vadd.f32 0.0, %v129
    %v131 = vpop.f32.mrf.mxu0
    %v132 = vpop.f32.mrf.mxu0
    %v133 = vpop.f32.mrf.mxu0
    %134 = vdwg.mxu0
    %v135 = vld [vmem:[%s2] sm:$0x1]
    %v136 = vld [vmem:[%s2 + $0x1] sm:$0x1]
    %v137 = vrot.slane %v130, 4
    %v138 = vadd.f32 %v130, %v137
    %v139 = vrot.slane %v138, 2
    %v140 = vadd.f32 %v138, %v139
    %v141 = vrot.slane %v140, 1
    %v142 = vadd.f32 %v140, %v141
    %v143 = vmul.f32 %v142, 0.125
    %v144 = vmul.f32 %v130, %v130
    %v145 = vrot.slane %v144, 4
    %v146 = vadd.f32 %v144, %v145
    %v147 = vrot.slane %v146, 2
    %v148 = vadd.f32 %v146, %v147
    %v149 = vrot.slane %v148, 1
    %v150 = vadd.f32 %v148, %v149
    %v151 = vmul.f32 %v150, 0.125
    %v152 = vmul.f32 %v143, %v143
    %v153 = vsub.f32 %v151, %v152
    %v154 = vadd.f32 %v153, 1e-05
    %v155 = vrsqrt.pop %v154
    %v156 = vmul.f32 %v135, %v155
    %v157 = vmul.f32 %v143, %v156
    %v158 = vsub.f32 %v136, %v157
    %v159 = vlaneseq
    %v160 = vshrl.u32 %v159, 7
    %v161 = vsub.s32 0, %v160
    %v162 = vrot.slane %v156, %v161
    %v163 = vmul.f32 %v130, %v162
    %v164 = vlaneseq
    %v165 = vshrl.u32 %v164, 7
    %v166 = vsub.s32 0, %v165
    %v167 = vrot.slane %v158, %v166
    %v168 = vadd.f32 %v163, %v167
    %v169 = vmax.f32 %v168, 0.0
    %v170 = vpack.c.bf16 %v169, %v169
    %s171 = scalar_lea.vmem [#allocation2], 64
    %v172 = vld [vmem:[%s171] sm:$0xf]
    %v173 = vld [vmem:[%s171 + $0x4] sm:$0xf]
    %v174 = vld [vmem:[%s171 + $0x8] sm:$0xf]
    %v175 = vld [vmem:[%s171 + $0xc] sm:$0xf]
    %v176 = vld [vmem:[%s171 + $0x10] sm:$0xf]
    %v177 = vld [vmem:[%s171 + $0x14] sm:$0xf]
    %v178 = vld [vmem:[%s171 + $0x18] sm:$0xf]
    %v179 = vld [vmem:[%s171 + $0x1c] sm:$0xf]
    %v180 = vld [vmem:[%s171 + $0x20] sm:$0xf]
    %v181 = vld [vmem:[%s171 + $0x24] sm:$0xf]
    %v182 = vld [vmem:[%s171 + $0x28] sm:$0xf]
    %v183 = vld [vmem:[%s171 + $0x2c] sm:$0xf]
    %v184 = vld [vmem:[%s171 + $0x30] sm:$0xf]
    %v185 = vld [vmem:[%s171 + $0x34] sm:$0xf]
    %v186 = vld [vmem:[%s171 + $0x38] sm:$0xf]
    %v187 = vld [vmem:[%s171 + $0x3c] sm:$0xf]
    %v204 = vunpack.c.l.b16 %v172
    %v205 = vunpack.c.l.b16 %v173
    %v206 = vunpack.c.l.b16 %v174
    %v207 = vunpack.c.l.b16 %v175
    %v208 = vunpack.c.l.b16 %v176
    %v209 = vunpack.c.l.b16 %v177
    %v210 = vunpack.c.l.b16 %v178
    %v211 = vunpack.c.l.b16 %v179
    %v212 = vunpack.c.l.b16 %v180
    %v213 = vunpack.c.l.b16 %v181
    %v214 = vunpack.c.l.b16 %v182
    %v215 = vunpack.c.l.b16 %v183
    %v216 = vunpack.c.l.b16 %v184
    %v217 = vunpack.c.l.b16 %v185
    %v218 = vunpack.c.l.b16 %v186
    %v219 = vunpack.c.l.b16 %v187
    %v220 = vpack.c.b16 %v205, %v204
    %v221 = vpack.c.b16 %v207, %v206
    %v222 = vpack.c.b16 %v209, %v208
    %v223 = vpack.c.b16 %v211, %v210
    %v224 = vpack.c.b16 %v213, %v212
    %v225 = vpack.c.b16 %v215, %v214
    %v226 = vpack.c.b16 %v217, %v216
    %v227 = vpack.c.b16 %v219, %v218
    %236 = vmatprep.subr.bf16.mxu0 0
    %237 = vmatpush1.bf16.msra.mxu0 %v227
    %238 = vmatprep.subr.bf16.mxu0 0
    %239 = vmatpush1.bf16.msra.mxu0 %v226
    %240 = vmatprep.subr.bf16.mxu0 0
    %241 = vmatpush1.bf16.msra.mxu0 %v225
    %242 = vmatprep.subr.bf16.mxu0 0
    %243 = vmatpush1.bf16.msra.mxu0 %v224
    %244 = vmatprep.subr.bf16.mxu0 0
    %245 = vmatpush1.bf16.msra.mxu0 %v223
    %246 = vmatprep.subr.bf16.mxu0 0
    %247 = vmatpush1.bf16.msra.mxu0 %v222
    %248 = vmatprep.subr.bf16.mxu0 0
    %249 = vmatpush1.bf16.msra.mxu0 %v221
    %250 = vmatprep.subr.bf16.mxu0 0
    %251 = vmatpush1.bf16.msra.mxu0 %v220
    %252 = vmatprep.subr.bf16.mxu0 0
    %253 = vmatpush2.bf16.msra.mxu0 0
    %254 = vmatprep.subr.bf16.mxu0 0
    %255 = vmatpush2.bf16.msra.mxu0 0
    %256 = vmatprep.subr.bf16.mxu0 0
    %257 = vmatpush2.bf16.msra.mxu0 0
    %258 = vmatprep.subr.bf16.mxu0 0
    %259 = vmatpush2.bf16.msra.mxu0 0
    %260 = vmatprep.subr.bf16.mxu0 0
    %261 = vmatpush2.bf16.msra.mxu0 0
    %262 = vmatprep.subr.bf16.mxu0 0
    %263 = vmatpush2.bf16.msra.mxu0 0
    %264 = vmatprep.subr.bf16.mxu0 0
    %265 = vmatpush2.bf16.msra.mxu0 0
    %266 = vmatprep.subr.bf16.mxu0 0
    %267 = vmatpush2.bf16.msra.mxu0 0
    %268 = vmatprep.mubr.bf16.mxu0 0
    %269 = vmatmul.mubr.bf16.gmra.mxu0 %v170
    %v270 = vpop.f32.mrf.mxu0
    %v271 = vadd.f32 0.0, %v270
    %v272 = vpop.f32.mrf.mxu0
    %v273 = vpop.f32.mrf.mxu0
    %v274 = vpop.f32.mrf.mxu0
    %275 = vdwg.mxu0
    %v276 = vld [vmem:[%s2 + $0x2] sm:$0x1]
    %v277 = vld [vmem:[%s2 + $0x3] sm:$0x1]
    %v278 = vrot.slane %v271, 4
    %v279 = vadd.f32 %v271, %v278
    %v280 = vrot.slane %v279, 2
    %v281 = vadd.f32 %v279, %v280
    %v282 = vrot.slane %v281, 1
    %v283 = vadd.f32 %v281, %v282
    %v284 = vmul.f32 %v283, 0.125
    %v285 = vmul.f32 %v271, %v271
    %v286 = vrot.slane %v285, 4
    %v287 = vadd.f32 %v285, %v286
    %v288 = vrot.slane %v287, 2
    %v289 = vadd.f32 %v287, %v288
    %v290 = vrot.slane %v289, 1
    %v291 = vadd.f32 %v289, %v290
    %v292 = vmul.f32 %v291, 0.125
    %v293 = vmul.f32 %v284, %v284
    %v294 = vsub.f32 %v292, %v293
    %v295 = vadd.f32 %v294, 1e-05
    %v296 = vrsqrt.pop %v295
    %v297 = vmul.f32 %v276, %v296
    %v298 = vmul.f32 %v284, %v297
    %v299 = vsub.f32 %v277, %v298
    %v300 = vlaneseq
    %v301 = vshrl.u32 %v300, 7
    %v302 = vsub.s32 0, %v301
    %v303 = vrot.slane %v297, %v302
    %v304 = vmul.f32 %v271, %v303
    %v305 = vlaneseq
    %v306 = vshrl.u32 %v305, 7
    %v307 = vsub.s32 0, %v306
    %v308 = vrot.slane %v299, %v307
    %v309 = vadd.f32 %v304, %v308
    %v310 = vmax.f32 %v309, 0.0
    %v311 = vpack.c.bf16 %v310, %v310
    %s312 = scalar_lea.vmem [#allocation2], 128
    %v313 = vld [vmem:[%s312] sm:$0xf]
    %v314 = vld [vmem:[%s312 + $0x4] sm:$0xf]
    %v315 = vld [vmem:[%s312 + $0x8] sm:$0xf]
    %v316 = vld [vmem:[%s312 + $0xc] sm:$0xf]
    %v317 = vld [vmem:[%s312 + $0x10] sm:$0xf]
    %v318 = vld [vmem:[%s312 + $0x14] sm:$0xf]
    %v319 = vld [vmem:[%s312 + $0x18] sm:$0xf]
    %v320 = vld [vmem:[%s312 + $0x1c] sm:$0xf]
    %v321 = vld [vmem:[%s312 + $0x20] sm:$0xf]
    %v322 = vld [vmem:[%s312 + $0x24] sm:$0xf]
    %v323 = vld [vmem:[%s312 + $0x28] sm:$0xf]
    %v324 = vld [vmem:[%s312 + $0x2c] sm:$0xf]
    %v325 = vld [vmem:[%s312 + $0x30] sm:$0xf]
    %v326 = vld [vmem:[%s312 + $0x34] sm:$0xf]
    %v327 = vld [vmem:[%s312 + $0x38] sm:$0xf]
    %v328 = vld [vmem:[%s312 + $0x3c] sm:$0xf]
    %v345 = vunpack.c.l.b16 %v313
    %v346 = vunpack.c.l.b16 %v314
    %v347 = vunpack.c.l.b16 %v315
    %v348 = vunpack.c.l.b16 %v316
    %v349 = vunpack.c.l.b16 %v317
    %v350 = vunpack.c.l.b16 %v318
    %v351 = vunpack.c.l.b16 %v319
    %v352 = vunpack.c.l.b16 %v320
    %v353 = vunpack.c.l.b16 %v321
    %v354 = vunpack.c.l.b16 %v322
    %v355 = vunpack.c.l.b16 %v323
    %v356 = vunpack.c.l.b16 %v324
    %v357 = vunpack.c.l.b16 %v325
    %v358 = vunpack.c.l.b16 %v326
    %v359 = vunpack.c.l.b16 %v327
    %v360 = vunpack.c.l.b16 %v328
    %v361 = vpack.c.b16 %v346, %v345
    %v362 = vpack.c.b16 %v348, %v347
    %v363 = vpack.c.b16 %v350, %v349
    %v364 = vpack.c.b16 %v352, %v351
    %v365 = vpack.c.b16 %v354, %v353
    %v366 = vpack.c.b16 %v356, %v355
    %v367 = vpack.c.b16 %v358, %v357
    %v368 = vpack.c.b16 %v360, %v359
    %377 = vmatprep.subr.bf16.mxu0 0
    %378 = vmatpush1.bf16.msra.mxu0 %v368
    %379 = vmatprep.subr.bf16.mxu0 0
    %380 = vmatpush1.bf16.msra.mxu0 %v367
    %381 = vmatprep.subr.bf16.mxu0 0
    %382 = vmatpush1.bf16.msra.mxu0 %v366
    %383 = vmatprep.subr.bf16.mxu0 0
    %384 = vmatpush1.bf16.msra.mxu0 %v365
    %385 = vmatprep.subr.bf16.mxu0 0
    %386 = vmatpush1.bf16.msra.mxu0 %v364
    %387 = vmatprep.subr.bf16.mxu0 0
    %388 = vmatpush1.bf16.msra.mxu0 %v363
    %389 = vmatprep.subr.bf16.mxu0 0
    %390 = vmatpush1.bf16.msra.mxu0 %v362
    %391 = vmatprep.subr.bf16.mxu0 0
    %392 = vmatpush1.bf16.msra.mxu0 %v361
    %393 = vmatprep.subr.bf16.mxu0 0
    %394 = vmatpush2.bf16.msra.mxu0 0
    %395 = vmatprep.subr.bf16.mxu0 0
    %396 = vmatpush2.bf16.msra.mxu0 0
    %397 = vmatprep.subr.bf16.mxu0 0
    %398 = vmatpush2.bf16.msra.mxu0 0
    %399 = vmatprep.subr.bf16.mxu0 0
    %400 = vmatpush2.bf16.msra.mxu0 0
    %401 = vmatprep.subr.bf16.mxu0 0
    %402 = vmatpush2.bf16.msra.mxu0 0
    %403 = vmatprep.subr.bf16.mxu0 0
    %404 = vmatpush2.bf16.msra.mxu0 0
    %405 = vmatprep.subr.bf16.mxu0 0
    %406 = vmatpush2.bf16.msra.mxu0 0
    %407 = vmatprep.subr.bf16.mxu0 0
    %408 = vmatpush2.bf16.msra.mxu0 0
    %409 = vmatprep.mubr.bf16.mxu0 0
    %410 = vmatmul.mubr.bf16.gmra.mxu0 %v311
    %v411 = vpop.f32.mrf.mxu0
    %v412 = vadd.f32 0.0, %v411
    %v413 = vpop.f32.mrf.mxu0
    %v414 = vpop.f32.mrf.mxu0
    %v415 = vpop.f32.mrf.mxu0
    %416 = vdwg.mxu0
    %v417 = vld [vmem:[%s2 + $0x4] sm:$0x1]
    %v418 = vld [vmem:[%s2 + $0x5] sm:$0x1]
    %v419 = vrot.slane %v412, 4
    %v420 = vadd.f32 %v412, %v419
    %v421 = vrot.slane %v420, 2
    %v422 = vadd.f32 %v420, %v421
    %v423 = vrot.slane %v422, 1
    %v424 = vadd.f32 %v422, %v423
    %v425 = vmul.f32 %v424, 0.125
    %v426 = vmul.f32 %v412, %v412
    %v427 = vrot.slane %v426, 4
    %v428 = vadd.f32 %v426, %v427
    %v429 = vrot.slane %v428, 2
    %v430 = vadd.f32 %v428, %v429
    %v431 = vrot.slane %v430, 1
    %v432 = vadd.f32 %v430, %v431
    %v433 = vmul.f32 %v432, 0.125
    %v434 = vmul.f32 %v425, %v425
    %v435 = vsub.f32 %v433, %v434
    %v436 = vadd.f32 %v435, 1e-05
    %v437 = vrsqrt.pop %v436
    %v438 = vmul.f32 %v417, %v437
    %v439 = vmul.f32 %v425, %v438
    %v440 = vsub.f32 %v418, %v439
    %v441 = vlaneseq
    %v442 = vshrl.u32 %v441, 7
    %v443 = vsub.s32 0, %v442
    %v444 = vrot.slane %v438, %v443
    %v445 = vmul.f32 %v412, %v444
    %v446 = vlaneseq
    %v447 = vshrl.u32 %v446, 7
    %v448 = vsub.s32 0, %v447
    %v449 = vrot.slane %v440, %v448
    %v450 = vadd.f32 %v445, %v449
    %v451 = vmax.f32 %v450, 0.0
    %v452 = vpack.c.bf16 %v451, %v451
    %s453 = scalar_lea.vmem [#allocation2], 192
    %v454 = vld [vmem:[%s453] sm:$0xf]
    %v455 = vld [vmem:[%s453 + $0x4] sm:$0xf]
    %v456 = vld [vmem:[%s453 + $0x8] sm:$0xf]
    %v457 = vld [vmem:[%s453 + $0xc] sm:$0xf]
    %v458 = vld [vmem:[%s453 + $0x10] sm:$0xf]
    %v459 = vld [vmem:[%s453 + $0x14] sm:$0xf]
    %v460 = vld [vmem:[%s453 + $0x18] sm:$0xf]
    %v461 = vld [vmem:[%s453 + $0x1c] sm:$0xf]
    %v462 = vld [vmem:[%s453 + $0x20] sm:$0xf]
    %v463 = vld [vmem:[%s453 + $0x24] sm:$0xf]
    %v464 = vld [vmem:[%s453 + $0x28] sm:$0xf]
    %v465 = vld [vmem:[%s453 + $0x2c] sm:$0xf]
    %v466 = vld [vmem:[%s453 + $0x30] sm:$0xf]
    %v467 = vld [vmem:[%s453 + $0x34] sm:$0xf]
    %v468 = vld [vmem:[%s453 + $0x38] sm:$0xf]
    %v469 = vld [vmem:[%s453 + $0x3c] sm:$0xf]
    %v470 = vld [vmem:[%s2 + $0x6] sm:$0x1]
    %v471 = vlaneseq
    %v472 = vshrl.u32 %v471, 7
    %v473 = vsub.s32 0, %v472
    %v474 = vrot.slane %v470, %v473
    %v491 = vunpack.c.l.b16 %v454
    %v492 = vunpack.c.l.b16 %v455
    %v493 = vunpack.c.l.b16 %v456
    %v494 = vunpack.c.l.b16 %v457
    %v495 = vunpack.c.l.b16 %v458
    %v496 = vunpack.c.l.b16 %v459
    %v497 = vunpack.c.l.b16 %v460
    %v498 = vunpack.c.l.b16 %v461
    %v499 = vunpack.c.l.b16 %v462
    %v500 = vunpack.c.l.b16 %v463
    %v501 = vunpack.c.l.b16 %v464
    %v502 = vunpack.c.l.b16 %v465
    %v503 = vunpack.c.l.b16 %v466
    %v504 = vunpack.c.l.b16 %v467
    %v505 = vunpack.c.l.b16 %v468
    %v506 = vunpack.c.l.b16 %v469
    %v507 = vpack.c.b16 %v492, %v491
    %v508 = vpack.c.b16 %v494, %v493
    %v509 = vpack.c.b16 %v496, %v495
    %v510 = vpack.c.b16 %v498, %v497
    %v511 = vpack.c.b16 %v500, %v499
    %v512 = vpack.c.b16 %v502, %v501
    %v513 = vpack.c.b16 %v504, %v503
    %v514 = vpack.c.b16 %v506, %v505
    %523 = vmatprep.subr.bf16.mxu0 0
    %524 = vmatpush1.bf16.msra.mxu0 %v514
    %525 = vmatprep.subr.bf16.mxu0 0
    %526 = vmatpush1.bf16.msra.mxu0 %v513
    %527 = vmatprep.subr.bf16.mxu0 0
    %528 = vmatpush1.bf16.msra.mxu0 %v512
    %529 = vmatprep.subr.bf16.mxu0 0
    %530 = vmatpush1.bf16.msra.mxu0 %v511
    %531 = vmatprep.subr.bf16.mxu0 0
    %532 = vmatpush1.bf16.msra.mxu0 %v510
    %533 = vmatprep.subr.bf16.mxu0 0
    %534 = vmatpush1.bf16.msra.mxu0 %v509
    %535 = vmatprep.subr.bf16.mxu0 0
    %536 = vmatpush1.bf16.msra.mxu0 %v508
    %537 = vmatprep.subr.bf16.mxu0 0
    %538 = vmatpush1.bf16.msra.mxu0 %v507
    %539 = vmatprep.subr.bf16.mxu0 0
    %540 = vmatpush2.bf16.msra.mxu0 0
    %541 = vmatprep.subr.bf16.mxu0 0
    %542 = vmatpush2.bf16.msra.mxu0 0
    %543 = vmatprep.subr.bf16.mxu0 0
    %544 = vmatpush2.bf16.msra.mxu0 0
    %545 = vmatprep.subr.bf16.mxu0 0
    %546 = vmatpush2.bf16.msra.mxu0 0
    %547 = vmatprep.subr.bf16.mxu0 0
    %548 = vmatpush2.bf16.msra.mxu0 0
    %549 = vmatprep.subr.bf16.mxu0 0
    %550 = vmatpush2.bf16.msra.mxu0 0
    %551 = vmatprep.subr.bf16.mxu0 0
    %552 = vmatpush2.bf16.msra.mxu0 0
    %553 = vmatprep.subr.bf16.mxu0 0
    %554 = vmatpush2.bf16.msra.mxu0 0
    %555 = vmatprep.mubr.bf16.mxu0 0
    %556 = vmatmul.mubr.bf16.gmra.mxu0 %v452
    %v557 = vpop.f32.mrf.mxu0
    %v558 = vadd.f32 %v474, %v557
    %v559 = vpop.f32.mrf.mxu0
    %v560 = vpop.f32.mrf.mxu0
    %v561 = vpop.f32.mrf.mxu0
    %562 = vdwg.mxu0
    %563 = vst [vmem:[%s3] sm:$0xff] %v558
    // Predicated region
    $region18: #{advanced_qnet_forward.1} parent=1 // pred_check
      _
    $region19: #{advanced_qnet_forward.1} parent=1 // pred_check_branch
      %565 = sbr.rel (0) target = $region21
    $region20: #{advanced_qnet_forward.1} parent=1 // pred_region
      _
    $region21: #{advanced_qnet_forward.1} parent=1 // pred_fallthru
      _
    // Predicated region
    $region22: #{advanced_qnet_forward.1} parent=1 // pred_check
      _
    $region23: #{advanced_qnet_forward.1} parent=1 // pred_check_branch
      %567 = sbr.rel (0) target = $region25
    $region24: #{advanced_qnet_forward.1} parent=1 // pred_region
      _
    $region25: #{advanced_qnet_forward.1} parent=1 // pred_fallthru
      _
    %568 = vsyncpa [#allocation3], 1

</llo_original>
